<compile_context>
chip_gen: v7x
topology: tpu7x:2x2x1
jax: 0.10.0
libtpu: 0.0.40
codegen_flags: <defaults>
</compile_context>

<pallas_src>
import functools

import jax
import jax.numpy as jnp
from jax.experimental import pallas as pl
from jax.experimental.pallas import tpu as pltpu


_LANE = 128
_SUBLANE = 8


def _round_up(x: int, m: int) -> int:
    return ((x + m - 1) // m) * m


def _cdiv(a: int, b: int) -> int:
    return (a + b - 1) // b


def _cols_to_row(v_col, c):
    """[C, 1] (values on sublanes) -> [1, C] (values on lanes).

    Done as a one-hot identity select + sublane reduce (compare / select / add
    only), avoiding a Mosaic transpose/relayout of a 1-lane value.  Cost is
    ~C^2/1024 vreg-ops per call -- negligible for C = 128.
    """
    i_sub = jax.lax.broadcasted_iota(jnp.int32, (c, c), 0)
    i_lane = jax.lax.broadcasted_iota(jnp.int32, (c, c), 1)
    return jnp.sum(jnp.where(i_sub == i_lane, v_col, 0.0), axis=0,
                   keepdims=True)


def _gnn_decoder_kernel(idx_ref, e_ref, scores_ref, w_e_ref, b_ref, out_ref,
                        *, chunk: int):
    """One edge tile.

    idx_ref    : [2, TE]  int32   (sublane 0 = src ids, 1 = dst ids; edges on
                                   lanes -- natural [2, E] layout)
    e_ref      : [TE, H]  f32/bf16 (edge embeddings in natural [E, H] layout;
                                   edges on sublanes)
    scores_ref : [N, 2]   f32     (resident; col 0 = x@w_row, col 1 = x@w_col)
    w_e_ref    : [1, H]   f32     (resident edge-feature weights)
    b_ref      : [1, 1]   f32
    out_ref    : [1, TE]  f32     (lane-dense output slab)
    """
    n_nodes = scores_ref.shape[0]
    te = out_ref.shape[1]

    s_row = scores_ref[:, 0:1]                                   # [N, 1]
    s_col = scores_ref[:, 1:2]                                   # [N, 1]
    w_e = w_e_ref[...].astype(jnp.float32)                       # [1, H]
    bias = b_ref[...]                                            # [1, 1]

    # Static sub-chunk loop over the edge (sublane) axis: bounds vreg pressure
    # when TE is large; every slice start below is a compile-time constant.
    for c in range(te // chunk):
        sl = pl.ds(c * chunk, chunk)

        # ---- edge-feature term: VPU multiply + lane reduce, then re-orient
        #      the per-edge scalars onto lanes (tiny identity contraction). --
        e_chunk = e_ref[sl, :].astype(jnp.float32)               # [C, H]
        et_col = jnp.sum(e_chunk * w_e, axis=1, keepdims=True)   # [C, 1]
        edge_term = _cols_to_row(et_col, chunk)                  # [1, C]

        # ---- node-score gather: one-hot select + sublane reduce.
        #      Edge ids >= N silently contribute 0 (padded lanes use id 0 and
        #      are sliced off in the wrapper). --------------------------------
        row_ids = idx_ref[0:1, sl]                               # [1, C]
        col_ids = idx_ref[1:2, sl]                               # [1, C]
        node_iota = jax.lax.broadcasted_iota(
            jnp.int32, (n_nodes, chunk), 0)                      # [N, C]
        gathered = (jnp.where(node_iota == row_ids, s_row, 0.0)
                    + jnp.where(node_iota == col_ids, s_col, 0.0))  # [N, C]
        node_term = jnp.sum(gathered, axis=0, keepdims=True)     # [1, C]

        out_ref[0:1, sl] = node_term + edge_term + bias          # bias bcast


@functools.partial(jax.jit, static_argnames=("edge_tile",))
def gnn_conv_decoder(x_embeddings, edge_embeddings, edge_index, weight, bias,
                     *, edge_tile: int = 2048):
    """x_embeddings: [N, H] (f32/bf16), edge_embeddings: [E, H] (f32/bf16),
    edge_index: [2, E] int, weight: [1, 3H] f32 (torch nn.Linear layout),
    bias: [1] f32.  Returns [E] f32."""
    n_nodes, hidden = x_embeddings.shape
    n_edges = edge_embeddings.shape[0]
    if n_edges == 0:
        return jnp.zeros((0,), jnp.float32)

    # --- edge tile: forced to a multiple of 128 lanes regardless of caller
    #     input; clamped so the grid keeps >= 2 steps when there is enough
    #     work (lets the "parallel" axis split across v7x's two TCs). --------
    te = max(_LANE, (int(edge_tile) // _LANE) * _LANE)
    te = min(te, _round_up(_cdiv(n_edges, 2), _LANE))
    num_tiles = _cdiv(n_edges, te)
    e_pad = num_tiles * te

    # --- fold the node-weight columns into per-node scalar scores ONCE
    #     (tiny matvec), dropping x from the kernel / VMEM entirely. ---------
    w_flat = jnp.asarray(weight, jnp.float32).reshape(3 * hidden)
    w_nodes = jnp.stack([w_flat[:hidden], w_flat[hidden:2 * hidden]], axis=1)
    scores = jnp.dot(x_embeddings.astype(jnp.float32), w_nodes,
                     precision=jax.lax.Precision.HIGHEST)             # [N, 2]
    w_edge = w_flat[2 * hidden:].reshape(1, hidden)                   # [1, H]
    b = jnp.asarray(bias, jnp.float32).reshape(1, 1)                  # [1, 1]

    # --- edge ids stay in their natural [2, E] (lane-dense) layout; padding
    #     them to the grid extent is 8 bytes/edge -- negligible next to the
    #     [E, H] stream, and keeps ids in padded lanes deterministic (node 0).
    idx = jnp.asarray(edge_index, jnp.int32)
    idx = jnp.pad(idx, ((0, 0), (0, e_pad - n_edges)))

    # --- edge embeddings: NATURAL [E, H] layout, no transpose, no full-array
    #     pad.  A ragged last tile is read via Pallas OOB block padding (the
    #     garbage rows only feed discarded output lanes).  Only a single tile
    #     smaller than TE is padded so every block start stays in bounds. ----
    emb = jnp.asarray(edge_embeddings)
    if n_edges < te:
        emb = jnp.pad(emb, ((0, te - n_edges), (0, 0)))

    chunk = _LANE                                 # 128 edges per inner chunk

    # --- VMEM budget from the actual (double-buffered) block sizes. ---------
    emb_itemsize = jnp.dtype(emb.dtype).itemsize
    vmem_bytes = (
        2 * te * _round_up(hidden, _LANE) * emb_itemsize          # emb blocks
        + 2 * _SUBLANE * te * 4                                   # idx blocks
        + 2 * _SUBLANE * te * 4                                   # out blocks
        + _round_up(n_nodes, _SUBLANE) * _LANE * 4                # score table
        + 2 * _SUBLANE * _round_up(hidden, _LANE) * 4)            # w_e + bias
    vmem_limit = int(min(max(2 * vmem_bytes, 16 * 2**20), 64 * 2**20))

    cost = pl.CostEstimate(
        flops=int(2 * hidden * e_pad                 # edge term
                  + 6 * n_nodes * e_pad              # one-hot gather (~6/elem)
                  + 3 * chunk * e_pad),              # identity re-orientation
        transcendentals=0,
        bytes_accessed=int(n_edges * hidden * emb_itemsize        # edge emb
                           + 2 * e_pad * 4                        # edge ids
                           + e_pad * 4                            # output
                           + n_nodes * 2 * 4                      # score table
                           + 3 * hidden * 4 + 4),                 # weights+bias
    )

    out = pl.pallas_call(
        functools.partial(_gnn_decoder_kernel, chunk=chunk),
        out_shape=jax.ShapeDtypeStruct((1, e_pad), jnp.float32),
        grid=(num_tiles,),
        in_specs=[
            pl.BlockSpec((2, te), lambda i: (0, i)),              # edge ids
            pl.BlockSpec((te, hidden), lambda i: (i, 0)),         # edge emb (natural [E,H])
            pl.BlockSpec((n_nodes, 2), lambda i: (0, 0)),         # node scores (resident)
            pl.BlockSpec((1, hidden), lambda i: (0, 0)),          # w_edge (resident)
            pl.BlockSpec((1, 1), lambda i: (0, 0)),               # bias (resident)
        ],
        out_specs=pl.BlockSpec((1, te), lambda i: (0, i)),        # lane-dense slab
        compiler_params=pltpu.CompilerParams(
            dimension_semantics=("parallel",),   # shard E-tiles across TCs on v7x
            vmem_limit_bytes=vmem_limit,
        ),
        cost_estimate=cost,
    )(idx, emb, scores, w_edge, b)

    return out[0, :n_edges]                                       # squeeze(-1)


def reference(x_embeddings, edge_embeddings, edge_index, weight, bias):
    row = edge_index[0]
    col = edge_index[1]
    feats = jnp.concatenate(
        [x_embeddings[row], x_embeddings[col], edge_embeddings],
        axis=1).astype(jnp.float32)
    w = jnp.asarray(weight, jnp.float32)
    b = jnp.asarray(bias, jnp.float32)
    return (jnp.dot(feats, w.T, precision=jax.lax.Precision.HIGHEST) + b)[:, 0]


if __name__ == "__main__":
    key = jax.random.PRNGKey(0)
    k1, k2, k3, k4, k5, k6 = jax.random.split(key, 6)

    hidden_dim = 32
    bound = 1.0 / jnp.sqrt(hidden_dim * 3.0)
    w = jax.random.uniform(k5, (1, hidden_dim * 3), jnp.float32, -bound, bound)
    b = jax.random.uniform(k6, (1,), jnp.float32, -bound, bound)

    # --- test 1: small graph, tile-aligned edge count (2 grid steps) --------
    n_nodes1, n_edges1 = 16, 256
    x1 = jax.random.normal(k1, (n_nodes1, hidden_dim), jnp.float32)
    e1 = jax.random.normal(k2, (n_edges1, hidden_dim), jnp.float32)
    ei1 = jnp.stack([
        jax.random.randint(k3, (n_edges1,), 0, n_nodes1),
        jax.random.randint(k4, (n_edges1,), 0, n_nodes1),
    ], axis=0)                                                     # [2, E]
    out1 = jax.block_until_ready(gnn_conv_decoder(x1, e1, ei1, w, b))
    ref1 = reference(x1, e1, ei1, w, b)
    assert out1.shape == (n_edges1,)
    assert jnp.allclose(out1, ref1, atol=1e-4, rtol=1e-4), (out1, ref1)

    # --- test 2: multi-tile grid with a ragged last tile (E % TE != 0) ------
    n_nodes2, n_edges2 = 64, 1000
    kk = jax.random.split(k1, 4)
    x2 = jax.random.normal(kk[0], (n_nodes2, hidden_dim), jnp.float32)
    e2 = jax.random.normal(kk[1], (n_edges2, hidden_dim), jnp.float32)
    ei2 = jnp.stack([
        jax.random.randint(kk[2], (n_edges2,), 0, n_nodes2),
        jax.random.randint(kk[3], (n_edges2,), 0, n_nodes2),
    ], axis=0)
    out2 = jax.block_until_ready(gnn_conv_decoder(x2, e2, ei2, w, b))
    ref2 = reference(x2, e2, ei2, w, b)
    assert out2.shape == (n_edges2,)
    assert jnp.allclose(out2, ref2, atol=1e-4, rtol=1e-4), (out2, ref2)

    # non-128-multiple caller tile is clamped/realigned (robustness fix)
    out2b = jax.block_until_ready(
        gnn_conv_decoder(x2, e2, ei2, w, b, edge_tile=500))
    assert jnp.allclose(out2b, ref2, atol=1e-4, rtol=1e-4), (out2b, ref2)

    # --- test 3: bf16 streamed inputs (halved HBM traffic), f32 math --------
    out3 = jax.block_until_ready(
        gnn_conv_decoder(x2.astype(jnp.bfloat16), e2.astype(jnp.bfloat16),
                         ei2, w, b))
    assert jnp.allclose(out3, ref2, atol=5e-2, rtol=5e-2), (out3, ref2)

    print("KERNEL_OK")
</pallas_src>

<mosaic_0001>
module attributes {stable_mosaic.version = 11 : i64} {
  func.func @_gnn_decoder_kernel(%arg0: i32, %arg1: memref<2x128xi32, #tpu.memory_space<vmem>>, %arg2: memref<128x32xf32, #tpu.memory_space<vmem>>, %arg3: memref<16x2xf32, #tpu.memory_space<vmem>>, %arg4: memref<1x32xf32, #tpu.memory_space<vmem>>, %arg5: memref<1x1xf32, #tpu.memory_space<vmem>>, %arg6: memref<1x128xf32, #tpu.memory_space<vmem>>) attributes {dimension_semantics = [#tpu.dimension_semantics<parallel>], iteration_bounds = array<i64: 2>, scalar_prefetch = 0 : i64, scratch_operands = 0 : i64, tpu.core_type = #tpu.core_type<tc>, window_params = [{transform_indices = @transform_0, window_bounds = array<i64: 2, 128>}, {transform_indices = @transform_1, window_bounds = array<i64: 128, 32>}, {pipeline_mode = #tpu.pipeline_mode<synchronous>, transform_indices = @transform_2, window_bounds = array<i64: 16, 2>}, {pipeline_mode = #tpu.pipeline_mode<synchronous>, transform_indices = @transform_3, window_bounds = array<i64: 1, 32>}, {pipeline_mode = #tpu.pipeline_mode<synchronous>, transform_indices = @transform_4, window_bounds = array<i64: 1, 1>}, {transform_indices = @transform_5, window_bounds = array<i64: 1, 128>}]} {
    %c0 = arith.constant 0 : index
    %c0_0 = arith.constant 0 : index
    %0 = vector.load %arg3[%c0, %c0_0] : memref<16x2xf32, #tpu.memory_space<vmem>>, vector<16x1xf32>
    %c0_1 = arith.constant 0 : index
    %c1 = arith.constant 1 : index
    %1 = vector.load %arg3[%c0_1, %c1] : memref<16x2xf32, #tpu.memory_space<vmem>>, vector<16x1xf32>
    %c0_2 = arith.constant 0 : index
    %c0_3 = arith.constant 0 : index
    %2 = vector.load %arg4[%c0_2, %c0_3] : memref<1x32xf32, #tpu.memory_space<vmem>>, vector<1x32xf32>
    %c0_4 = arith.constant 0 : index
    %c0_5 = arith.constant 0 : index
    %3 = vector.load %arg5[%c0_4, %c0_5] : memref<1x1xf32, #tpu.memory_space<vmem>>, vector<1x1xf32>
    %c0_6 = arith.constant 0 : index
    %c0_7 = arith.constant 0 : index
    %4 = vector.load %arg2[%c0_6, %c0_7] : memref<128x32xf32, #tpu.memory_space<vmem>>, vector<128x32xf32>
    %5 = vector.broadcast %2 : vector<1x32xf32> to vector<128x32xf32>
    %6 = arith.mulf %4, %5 : vector<128x32xf32>
    %cst = arith.constant dense<0.000000e+00> : vector<128xf32>
    %7 = vector.multi_reduction <add>, %6, %cst [1] : vector<128x32xf32> to vector<128xf32>
    %8 = vector.shape_cast %7 : vector<128xf32> to vector<128x1xf32>
    %9 = tpu.iota {dimensions = array<i32: 0>} : vector<128x128xi32>
    %10 = tpu.iota {dimensions = array<i32: 1>} : vector<128x128xi32>
    %11 = arith.cmpi eq, %9, %10 : vector<128x128xi32>
    %cst_8 = arith.constant 0.000000e+00 : f32
    %12 = vector.shape_cast %8 : vector<128x1xf32> to vector<128x1xf32>
    %13 = vector.broadcast %12 : vector<128x1xf32> to vector<128x128xf32>
    %14 = vector.broadcast %cst_8 : f32 to vector<128x128xf32>
    %15 = arith.select %11, %13, %14 : vector<128x128xi1>, vector<128x128xf32>
    %cst_9 = arith.constant dense<0.000000e+00> : vector<128xf32>
    %16 = vector.multi_reduction <add>, %15, %cst_9 [0] : vector<128x128xf32> to vector<128xf32>
    %17 = vector.shape_cast %16 : vector<128xf32> to vector<1x128xf32>
    %c0_10 = arith.constant 0 : index
    %c0_11 = arith.constant 0 : index
    %18 = vector.load %arg1[%c0_10, %c0_11] : memref<2x128xi32, #tpu.memory_space<vmem>>, vector<1x128xi32>
    %c1_12 = arith.constant 1 : index
    %c0_13 = arith.constant 0 : index
    %19 = vector.load %arg1[%c1_12, %c0_13] : memref<2x128xi32, #tpu.memory_space<vmem>>, vector<1x128xi32>
    %20 = tpu.iota {dimensions = array<i32: 0>} : vector<16x128xi32>
    %21 = vector.broadcast %18 : vector<1x128xi32> to vector<16x128xi32>
    %22 = arith.cmpi eq, %20, %21 : vector<16x128xi32>
    %cst_14 = arith.constant 0.000000e+00 : f32
    %23 = vector.shape_cast %0 : vector<16x1xf32> to vector<16x1xf32>
    %24 = vector.broadcast %23 : vector<16x1xf32> to vector<16x128xf32>
    %25 = vector.broadcast %cst_14 : f32 to vector<16x128xf32>
    %26 = arith.select %22, %24, %25 : vector<16x128xi1>, vector<16x128xf32>
    %27 = vector.broadcast %19 : vector<1x128xi32> to vector<16x128xi32>
    %28 = arith.cmpi eq, %20, %27 : vector<16x128xi32>
    %cst_15 = arith.constant 0.000000e+00 : f32
    %29 = vector.shape_cast %1 : vector<16x1xf32> to vector<16x1xf32>
    %30 = vector.broadcast %29 : vector<16x1xf32> to vector<16x128xf32>
    %31 = vector.broadcast %cst_15 : f32 to vector<16x128xf32>
    %32 = arith.select %28, %30, %31 : vector<16x128xi1>, vector<16x128xf32>
    %33 = arith.addf %26, %32 : vector<16x128xf32>
    %cst_16 = arith.constant dense<0.000000e+00> : vector<128xf32>
    %34 = vector.multi_reduction <add>, %33, %cst_16 [0] : vector<16x128xf32> to vector<128xf32>
    %35 = vector.shape_cast %34 : vector<128xf32> to vector<1x128xf32>
    %36 = arith.addf %35, %17 : vector<1x128xf32>
    %37 = vector.broadcast %3 : vector<1x1xf32> to vector<1x128xf32>
    %38 = arith.addf %36, %37 : vector<1x128xf32>
    %c0_17 = arith.constant 0 : index
    %c0_18 = arith.constant 0 : index
    %39 = vector.load %arg6[%c0_17, %c0_18] : memref<1x128xf32, #tpu.memory_space<vmem>>, vector<1x128xf32>
    tpu.vector_store %arg6[%c0_17, %c0_18], %38 {strides = array<i32>} : memref<1x128xf32, #tpu.memory_space<vmem>>, vector<1x128xf32>,
    return
  }
  func.func @transform_0(%arg0: i32) -> (i32, i32) {
    %c0_i32 = arith.constant 0 : i32
    %c0_i32_0 = arith.constant 0 : i32
    return %c0_i32, %arg0 : i32, i32
  }
  func.func @transform_1(%arg0: i32) -> (i32, i32) {
    %c0_i32 = arith.constant 0 : i32
    %c0_i32_0 = arith.constant 0 : i32
    return %arg0, %c0_i32 : i32, i32
  }
  func.func @transform_2(%arg0: i32) -> (i32, i32) {
    %c0_i32 = arith.constant 0 : i32
    %c0_i32_0 = arith.constant 0 : i32
    %c0_i32_1 = arith.constant 0 : i32
    return %c0_i32, %c0_i32_0 : i32, i32
  }
  func.func @transform_3(%arg0: i32) -> (i32, i32) {
    %c0_i32 = arith.constant 0 : i32
    %c0_i32_0 = arith.constant 0 : i32
    %c0_i32_1 = arith.constant 0 : i32
    return %c0_i32, %c0_i32_0 : i32, i32
  }
  func.func @transform_4(%arg0: i32) -> (i32, i32) {
    %c0_i32 = arith.constant 0 : i32
    %c0_i32_0 = arith.constant 0 : i32
    %c0_i32_1 = arith.constant 0 : i32
    return %c0_i32, %c0_i32_0 : i32, i32
  }
  func.func @transform_5(%arg0: i32) -> (i32, i32) {
    %c0_i32 = arith.constant 0 : i32
    %c0_i32_0 = arith.constant 0 : i32
    return %c0_i32, %arg0 : i32, i32
  }
}

</mosaic_0001>

<llo_original>
// kernel: gnn_conv_decoder.1
$region0: #{gnn_conv_decoder.1}
  #allocation0 [shape = 'u32[]', space=smem, size = 0x4, offset = 0x4, fixed_abs, tag = 'smem constant byte address 0x4 - core index']
  #allocation1 [shape = 'u32[144,128]{1,0:T(1,128)}', space=vmem, size = 0x12000, scoped, tag = 'internal scratch']
  #allocation2 [shape = 'f32[1,1]{1,0:T(1,128)S(1)}', space=vmem, size = 0x200, scoped, tag = 'scoped memory for gnn_conv_decoder.1']
  %s0 = inlined_call_operand.vmem [shape: s32[2,256], index: 0, kind: input, shape index: {}]
  %s1 = inlined_call_operand.vmem [shape: f32[256,32], index: 1, kind: input, shape index: {}]
  %s2 = inlined_call_operand.vmem [shape: f32[16,2], index: 2, kind: input, shape index: {}]
  %s3 = inlined_call_operand.vmem [shape: f32[1,32], index: 3, kind: input, shape index: {}]
  %s4 = inlined_call_operand.<no memory space> [shape: f32[1,1], index: 4, kind: input, shape index: {}]
  %s5 = inlined_call_operand.hbm [shape: f32[1,256], index: 5, kind: output, shape index: {}]
  %s6 = sld [smem:[#allocation0]]
  $region53: #{gnn_conv_decoder.1} parent=0
    _
  %s8 = ssub.s32 1, %s6
  %s9 = scalar_select 0, %s8, %s6
  %v10 = vstv %s4
  %11 = vst [vmem:[#allocation2] sm:$0x1] %v10
  $region1: #{gnn_conv_decoder.1} parent=0
    #allocation3 [shape = 'u8[1024]{0}', space=vmem, size = 0x400, scoped, tag = 'output window, operand 0']
    #allocation4 [shape = 's32[2]{0}', space=sflag, size = 0x8, scoped, tag = 'scoped memory for gnn_conv_decoder.1']
    %12 = vsyncpa [#allocation4], 0
    %s13 = scalar_lea.sflag [#allocation4], 1
    %14 = vsyncpa %s13, 0
    loop: start=0, step=1, limit=4
    $region2: #{gnn_conv_decoder.1} parent=1 // loop_pre_header
      _
    $region3: #{gnn_conv_decoder.1} parent=1 // loop_header
      %s16 = sphi 0, %s20
      %p17 = scmp.ge.s32.totalorder %s16, 4
      %s26 = sphi 0, %s28
      %s29 = sphi 0, %s26
      %s30 = sphi 0, %s29
      %s46 = sphi 0, %s30
      %s52 = sphi 0, %s54
      %s55 = sphi 0, %s52
      %s56 = sphi 0, %s55
      %s72 = sphi 0, %s56
      %s76 = sphi 0, %s76
      %s78 = sphi 0, %s76
      %s79 = sphi 0, %s78
      %s93 = sphi 0, %s79
      %s97 = sphi 0, %s97
      %s99 = sphi 0, %s97
      %s100 = sphi 0, %s99
      %s114 = sphi 0, %s100
      %s118 = sphi 0, %s118
      %s120 = sphi 0, %s118
      %s121 = sphi 0, %s120
      %s135 = sphi 0, %s121
      %s141 = sphi 0, %s143
      %s144 = sphi 0, %s141
      %s145 = sphi 0, %s144
      %s161 = sphi 0, %s145
    $region4: #{gnn_conv_decoder.1} parent=1 // loop_header_branch
      %19 = sbr.rel (%p17) target = $region8
    $region5: #{gnn_conv_decoder.1} parent=1 // loop_body
      %s21 = ssub.s32 %s16, 1
      %s22 = ssub.s32 %s16, 2
      %s23 = sadd.s32 %s16, 1
      %s24 = ssub.s32 %s16, %s23
      %p25 = scmp.eq.s32.totalorder %s24, 0
      %s27 = sadd.s32 %s26, 1
      %s28 = scalar_select %p25, %s26, %s27
      %p31 = pneg %p25
      %p32 = scmp.eq.s32.totalorder %s16, 1
      %p33 = por %p31, %p32
      %p34 = scmp.ne.s32.totalorder %s26, %s29
      %p35 = scmp.eq.s32.totalorder %s16, 0
      %p36 = por %p34, %p35
      %p37 = scmp.ne.s32.totalorder %s26, %s29
      %p38 = scmp.eq.s32.totalorder %s21, 1
      %p39 = por %p37, %p38
      %p40 = scmp.ne.s32.totalorder %s29, %s30
      %p41 = scmp.eq.s32.totalorder %s21, 0
      %p42 = por %p40, %p41
      %p43 = scmp.ne.s32.totalorder %s29, %s30
      %p44 = scmp.eq.s32.totalorder %s22, 1
      %p45 = por %p43, %p44
      %p47 = scmp.ne.s32.totalorder %s30, %s46
      %p48 = scmp.eq.s32.totalorder %s22, 0
      %p49 = por %p47, %p48
      %s50 = ssub.s32 %s16, %s23
      %p51 = scmp.eq.s32.totalorder %s50, 0
      %s53 = sadd.s32 %s52, 1
      %s54 = scalar_select %p51, %s52, %s53
      %p57 = pneg %p51
      %p58 = scmp.eq.s32.totalorder %s16, 1
      %p59 = por %p57, %p58
      %p60 = scmp.ne.s32.totalorder %s52, %s55
      %p61 = scmp.eq.s32.totalorder %s16, 0
      %p62 = por %p60, %p61
      %p63 = scmp.ne.s32.totalorder %s52, %s55
      %p64 = scmp.eq.s32.totalorder %s21, 1
      %p65 = por %p63, %p64
      %p66 = scmp.ne.s32.totalorder %s55, %s56
      %p67 = scmp.eq.s32.totalorder %s21, 0
      %p68 = por %p66, %p67
      %p69 = scmp.ne.s32.totalorder %s55, %s56
      %p70 = scmp.eq.s32.totalorder %s22, 1
      %p71 = por %p69, %p70
      %p73 = scmp.ne.s32.totalorder %s56, %s72
      %p74 = scmp.eq.s32.totalorder %s22, 0
      %p75 = por %p73, %p74
      %s77 = sadd.s32 %s76, 1
      %p80 = scmp.eq.s32.totalorder %s16, 1
      %p81 = scmp.ne.s32.totalorder %s76, %s78
      %p82 = scmp.eq.s32.totalorder %s16, 0
      %p83 = por %p81, %p82
      %p84 = scmp.ne.s32.totalorder %s76, %s78
      %p85 = scmp.eq.s32.totalorder %s21, 1
      %p86 = por %p84, %p85
      %p87 = scmp.ne.s32.totalorder %s78, %s79
      %p88 = scmp.eq.s32.totalorder %s21, 0
      %p89 = por %p87, %p88
      %p90 = scmp.ne.s32.totalorder %s78, %s79
      %p91 = scmp.eq.s32.totalorder %s22, 1
      %p92 = por %p90, %p91
      %p94 = scmp.ne.s32.totalorder %s79, %s93
      %p95 = scmp.eq.s32.totalorder %s22, 0
      %p96 = por %p94, %p95
      %s98 = sadd.s32 %s97, 1
      %p101 = scmp.eq.s32.totalorder %s16, 1
      %p102 = scmp.ne.s32.totalorder %s97, %s99
      %p103 = scmp.eq.s32.totalorder %s16, 0
      %p104 = por %p102, %p103
      %p105 = scmp.ne.s32.totalorder %s97, %s99
      %p106 = scmp.eq.s32.totalorder %s21, 1
      %p107 = por %p105, %p106
      %p108 = scmp.ne.s32.totalorder %s99, %s100
      %p109 = scmp.eq.s32.totalorder %s21, 0
      %p110 = por %p108, %p109
      %p111 = scmp.ne.s32.totalorder %s99, %s100
      %p112 = scmp.eq.s32.totalorder %s22, 1
      %p113 = por %p111, %p112
      %p115 = scmp.ne.s32.totalorder %s100, %s114
      %p116 = scmp.eq.s32.totalorder %s22, 0
      %p117 = por %p115, %p116
      %s119 = sadd.s32 %s118, 1
      %p122 = scmp.eq.s32.totalorder %s16, 1
      %p123 = scmp.ne.s32.totalorder %s118, %s120
      %p124 = scmp.eq.s32.totalorder %s16, 0
      %p125 = por %p123, %p124
      %p126 = scmp.ne.s32.totalorder %s118, %s120
      %p127 = scmp.eq.s32.totalorder %s21, 1
      %p128 = por %p126, %p127
      %p129 = scmp.ne.s32.totalorder %s120, %s121
      %p130 = scmp.eq.s32.totalorder %s21, 0
      %p131 = por %p129, %p130
      %p132 = scmp.ne.s32.totalorder %s120, %s121
      %p133 = scmp.eq.s32.totalorder %s22, 1
      %p134 = por %p132, %p133
      %p136 = scmp.ne.s32.totalorder %s121, %s135
      %p137 = scmp.eq.s32.totalorder %s22, 0
      %p138 = por %p136, %p137
      %s139 = ssub.s32 %s16, %s23
      %p140 = scmp.eq.s32.totalorder %s139, 0
      %s142 = sadd.s32 %s141, 1
      %s143 = scalar_select %p140, %s141, %s142
      %p146 = pneg %p140
      %p147 = scmp.eq.s32.totalorder %s16, 1
      %p148 = por %p146, %p147
      %p149 = scmp.ne.s32.totalorder %s141, %s144
      %p150 = scmp.eq.s32.totalorder %s16, 0
      %p151 = por %p149, %p150
      %p152 = scmp.ne.s32.totalorder %s141, %s144
      %p153 = scmp.eq.s32.totalorder %s21, 1
      %p154 = por %p152, %p153
      %p155 = scmp.ne.s32.totalorder %s144, %s145
      %p156 = scmp.eq.s32.totalorder %s21, 0
      %p157 = por %p155, %p156
      %p158 = scmp.ne.s32.totalorder %s144, %s145
      %p159 = scmp.eq.s32.totalorder %s22, 1
      %p160 = por %p158, %p159
      %p162 = scmp.ne.s32.totalorder %s145, %s161
      %p163 = scmp.eq.s32.totalorder %s22, 0
      %p164 = por %p162, %p163
      %p165 = scmp.le.s32.totalorder 1, %s16
      %p166 = scmp.lt.s32.totalorder %s16, 3
      %p167 = pnand %p165, %p166
      %p168 = pneg %p167
      // Predicated region
      $region9: #{gnn_conv_decoder.1} parent=5 // pred_check
        _
      $region10: #{gnn_conv_decoder.1} parent=5 // pred_check_branch
        %170 = sbr.rel (%p167) target = $region12
      $region11: #{gnn_conv_decoder.1} parent=5 // pred_region
        %s171 = ssub.s32 %s16, 1
        // Predicated region
        $region13: #{gnn_conv_decoder.1} parent=11 // pred_check
          %p172 = pneg %p89
        $region14: #{gnn_conv_decoder.1} parent=11 // pred_check_branch
          %174 = sbr.rel (%p172) target = $region16
        $region15: #{gnn_conv_decoder.1} parent=11 // pred_region
          _
        $region16: #{gnn_conv_decoder.1} parent=11 // pred_fallthru
          _
        // Predicated region
        $region17: #{gnn_conv_decoder.1} parent=11 // pred_check
          %p175 = pneg %p110
        $region18: #{gnn_conv_decoder.1} parent=11 // pred_check_branch
          %177 = sbr.rel (%p175) target = $region20
        $region19: #{gnn_conv_decoder.1} parent=11 // pred_region
          _
        $region20: #{gnn_conv_decoder.1} parent=11 // pred_fallthru
          _
        // Predicated region
        $region21: #{gnn_conv_decoder.1} parent=11 // pred_check
          %p178 = pneg %p131
        $region22: #{gnn_conv_decoder.1} parent=11 // pred_check_branch
          %180 = sbr.rel (%p178) target = $region24
        $region23: #{gnn_conv_decoder.1} parent=11 // pred_region
          _
        $region24: #{gnn_conv_decoder.1} parent=11 // pred_fallthru
          _
      $region12: #{gnn_conv_decoder.1} parent=5 // pred_fallthru
        _
      %p181 = scmp.lt.s32.totalorder %s16, 2
      // Predicated region
      $region25: #{gnn_conv_decoder.1} parent=5 // pred_check
        %p182 = pneg %p181
      $region26: #{gnn_conv_decoder.1} parent=5 // pred_check_branch
        %184 = sbr.rel (%p182) target = $region28
      $region27: #{gnn_conv_decoder.1} parent=5 // pred_region
        // Predicated region
        $region29: #{gnn_conv_decoder.1} parent=27 // pred_check
          %p185 = pneg %p36
        $region30: #{gnn_conv_decoder.1} parent=27 // pred_check_branch
          %187 = sbr.rel (%p185) target = $region32
        $region31: #{gnn_conv_decoder.1} parent=27 // pred_region
          %p188 = scmp.lt.s32.totalorder %s16, 1
          %s189 = scalar_select %p188, %s16, 1
          %s190 = smul.addr %s189, 2
          %s191 = scalar_lea.vmem %s0, %s190
        $region32: #{gnn_conv_decoder.1} parent=27 // pred_fallthru
          _
        // Predicated region
        $region33: #{gnn_conv_decoder.1} parent=27 // pred_check
          %p192 = pneg %p62
        $region34: #{gnn_conv_decoder.1} parent=27 // pred_check_branch
          %194 = sbr.rel (%p192) target = $region36
        $region35: #{gnn_conv_decoder.1} parent=27 // pred_region
          %s195 = smul.u32 16, %s16
          %p196 = scmp.lt.s32.totalorder %s195, 31
          %s197 = scalar_select %p196, %s195, 31
          %s198 = smul.addr %s197, 8
          %s199 = scalar_lea.vmem %s1, %s198
          %s200 = smul.u32 16, %s16
        $region36: #{gnn_conv_decoder.1} parent=27 // pred_fallthru
          _
      $region28: #{gnn_conv_decoder.1} parent=5 // pred_fallthru
        _
      %p201 = scmp.le.s32.totalorder 1, %s16
      %p202 = scmp.lt.s32.totalorder %s16, 3
      %p203 = pnand %p201, %p202
      %p204 = pneg %p203
      // Predicated region
      $region37: #{gnn_conv_decoder.1} parent=5 // pred_check
        _
      $region38: #{gnn_conv_decoder.1} parent=5 // pred_check_branch
        %206 = sbr.rel (%p203) target = $region40
      $region39: #{gnn_conv_decoder.1} parent=5 // pred_region
        %s207 = ssub.s32 %s16, 1
        %p208 = scmp.lt.s32.totalorder %s21, 1
        %s209 = scalar_select %p208, %s21, 1
        %s210 = smul.addr %s209, 2
        %s211 = scalar_lea.vmem %s0, %s210
        %p212 = pneg %p42
        %p213 = pneg %p39
        %s214 = smul.u32 16, %s21
        %p215 = scmp.lt.s32.totalorder %s214, 31
        %s216 = scalar_select %p215, %s214, 31
        %s217 = smul.addr %s216, 8
        %s218 = scalar_lea.vmem %s1, %s217
        %p219 = pneg %p68
        %p220 = pneg %p65
        %p221 = pneg %p89
        %p222 = pneg %p86
        %p223 = pneg %p110
        %p224 = pneg %p107
        %p225 = pneg %p131
        %p226 = pneg %p128
        %p227 = pneg %p157
        %p228 = pneg %p154
        %s229 = sand.u32 %s144, 1
        %s230 = scalar_lea.sflag [#allocation4], %s229
        %s231 = sand.u32 %s144, 1
        %s232 = scalar_lea.vmem [#allocation3], %s231
        %p233 = scmp.lt.s32.totalorder %s21, 1
        %s234 = scalar_select %p233, %s21, 1
        %s235 = smul.addr %s234, 2
        %s236 = scalar_lea.vmem %s0, %s235
        %s237 = smul.u32 16, %s21
        %p238 = scmp.lt.s32.totalorder %s237, 31
        %s239 = scalar_select %p238, %s237, 31
        %s240 = smul.addr %s239, 8
        %s241 = scalar_lea.vmem %s1, %s240
        %s242 = smul.u32 16, %s21
        %v243 = vld [vmem:[%s2] sm:$0xff]
        %v244 = vld [vmem:[%s2 + $0x8] sm:$0xff]
        %v245 = vld [vmem:[%s3] sm:$0x1]
        %v246 = vld [vmem:[#allocation2] sm:$0x1]
        %v247 = vld [vmem:[%s241] sm:$0xff]
        %v248 = vld [vmem:[%s241 + $0x8] sm:$0xff]
        %v249 = vld [vmem:[%s241 + $0x10] sm:$0xff]
        %v250 = vld [vmem:[%s241 + $0x18] sm:$0xff]
        %v251 = vld [vmem:[%s241 + $0x20] sm:$0xff]
        %v252 = vld [vmem:[%s241 + $0x28] sm:$0xff]
        %v253 = vld [vmem:[%s241 + $0x30] sm:$0xff]
        %v254 = vld [vmem:[%s241 + $0x38] sm:$0xff]
        %v255 = vld [vmem:[%s241 + $0x40] sm:$0xff]
        %v256 = vld [vmem:[%s241 + $0x48] sm:$0xff]
        %v257 = vld [vmem:[%s241 + $0x50] sm:$0xff]
        %v258 = vld [vmem:[%s241 + $0x58] sm:$0xff]
        %v259 = vld [vmem:[%s241 + $0x60] sm:$0xff]
        %v260 = vld [vmem:[%s241 + $0x68] sm:$0xff]
        %v261 = vld [vmem:[%s241 + $0x70] sm:$0xff]
        %v262 = vld [vmem:[%s241 + $0x78] sm:$0xff]
        %v264 = vlaneseq
        %v265 = vshrl.u32 %v264, 7
        %v266 = vsub.s32 0, %v265
        %v267 = vrot.slane %v245, %v266
        %v269 = vmul.f32 %v247, %v267
        %v270 = vmul.f32 %v248, %v267
        %v271 = vmul.f32 %v249, %v267
        %v272 = vmul.f32 %v250, %v267
        %v273 = vmul.f32 %v251, %v267
        %v274 = vmul.f32 %v252, %v267
        %v275 = vmul.f32 %v253, %v267
        %v276 = vmul.f32 %v254, %v267
        %v277 = vmul.f32 %v255, %v267
        %v278 = vmul.f32 %v256, %v267
        %v279 = vmul.f32 %v257, %v267
        %v280 = vmul.f32 %v258, %v267
        %v281 = vmul.f32 %v259, %v267
        %v282 = vmul.f32 %v260, %v267
        %v283 = vmul.f32 %v261, %v267
        %v284 = vmul.f32 %v262, %v267
        %vm285 = vcmask 261120
        %v286 = vsel %vm285, %v269, 0.0
        %287 = vadd.xlane.f32.xlu0 %v286
        %v288 = vpop.xlane.xlu0 %287
        %v289 = vsel %vm285, %v270, 0.0
        %290 = vadd.xlane.f32.xlu0 %v289
        %v291 = vpop.xlane.xlu0 %290
        %v292 = vsel %vm285, %v271, 0.0
        %293 = vadd.xlane.f32.xlu0 %v292
        %v294 = vpop.xlane.xlu0 %293
        %v295 = vsel %vm285, %v272, 0.0
        %296 = vadd.xlane.f32.xlu0 %v295
        %v297 = vpop.xlane.xlu0 %296
        %v298 = vsel %vm285, %v273, 0.0
        %299 = vadd.xlane.f32.xlu0 %v298
        %v300 = vpop.xlane.xlu0 %299
        %v301 = vsel %vm285, %v274, 0.0
        %302 = vadd.xlane.f32.xlu0 %v301
        %v303 = vpop.xlane.xlu0 %302
        %v304 = vsel %vm285, %v275, 0.0
        %305 = vadd.xlane.f32.xlu0 %v304
        %v306 = vpop.xlane.xlu0 %305
        %v307 = vsel %vm285, %v276, 0.0
        %308 = vadd.xlane.f32.xlu0 %v307
        %v309 = vpop.xlane.xlu0 %308
        %v310 = vsel %vm285, %v277, 0.0
        %311 = vadd.xlane.f32.xlu0 %v310
        %v312 = vpop.xlane.xlu0 %311
        %v313 = vsel %vm285, %v278, 0.0
        %314 = vadd.xlane.f32.xlu0 %v313
        %v315 = vpop.xlane.xlu0 %314
        %v316 = vsel %vm285, %v279, 0.0
        %317 = vadd.xlane.f32.xlu0 %v316
        %v318 = vpop.xlane.xlu0 %317
        %v319 = vsel %vm285, %v280, 0.0
        %320 = vadd.xlane.f32.xlu0 %v319
        %v321 = vpop.xlane.xlu0 %320
        %v322 = vsel %vm285, %v281, 0.0
        %323 = vadd.xlane.f32.xlu0 %v322
        %v324 = vpop.xlane.xlu0 %323
        %v325 = vsel %vm285, %v282, 0.0
        %326 = vadd.xlane.f32.xlu0 %v325
        %v327 = vpop.xlane.xlu0 %326
        %v328 = vsel %vm285, %v283, 0.0
        %329 = vadd.xlane.f32.xlu0 %v328
        %v330 = vpop.xlane.xlu0 %329
        %v331 = vsel %vm285, %v284, 0.0
        %332 = vadd.xlane.f32.xlu0 %v331
        %v333 = vpop.xlane.xlu0 %332
        %v334 = vlaneseq
        %v335 = vshrl.u32 %v334, 7
        %v336 = vadd.s32 %v335, 8
        %v337 = vadd.s32 %v335, 16
        %v338 = vadd.s32 %v335, 24
        %v339 = vadd.s32 %v335, 32
        %v340 = vadd.s32 %v335, 40
        %v341 = vadd.s32 %v335, 48
        %v342 = vadd.s32 %v335, 56
        %v343 = vadd.s32 %v335, 64
        %v344 = vadd.s32 %v335, 72
        %v345 = vadd.s32 %v335, 80
        %v346 = vadd.s32 %v335, 88
        %v347 = vadd.s32 %v335, 96
        %v348 = vadd.s32 %v335, 104
        %v349 = vadd.s32 %v335, 112
        %v350 = vadd.s32 %v335, 120
        %v351 = vlaneseq
        %v352 = vand.u32 %v351, 127
        %vm353 = vcmp.eq.s32.totalorder %v335, %v352
        %vm354 = vcmp.eq.s32.totalorder %v336, %v352
        %vm355 = vcmp.eq.s32.totalorder %v337, %v352
        %vm356 = vcmp.eq.s32.totalorder %v338, %v352
        %vm357 = vcmp.eq.s32.totalorder %v339, %v352
        %vm358 = vcmp.eq.s32.totalorder %v340, %v352
        %vm359 = vcmp.eq.s32.totalorder %v341, %v352
        %vm360 = vcmp.eq.s32.totalorder %v342, %v352
        %vm361 = vcmp.eq.s32.totalorder %v343, %v352
        %vm362 = vcmp.eq.s32.totalorder %v344, %v352
        %vm363 = vcmp.eq.s32.totalorder %v345, %v352
        %vm364 = vcmp.eq.s32.totalorder %v346, %v352
        %vm365 = vcmp.eq.s32.totalorder %v347, %v352
        %vm366 = vcmp.eq.s32.totalorder %v348, %v352
        %vm367 = vcmp.eq.s32.totalorder %v349, %v352
        %vm368 = vcmp.eq.s32.totalorder %v350, %v352
        %v369 = vsel %vm353, %v288, 0.0
        %v370 = vsel %vm354, %v291, 0.0
        %v371 = vsel %vm355, %v294, 0.0
        %v372 = vsel %vm356, %v297, 0.0
        %v373 = vsel %vm357, %v300, 0.0
        %v374 = vsel %vm358, %v303, 0.0
        %v375 = vsel %vm359, %v306, 0.0
        %v376 = vsel %vm360, %v309, 0.0
        %v377 = vsel %vm361, %v312, 0.0
        %v378 = vsel %vm362, %v315, 0.0
        %v379 = vsel %vm363, %v318, 0.0
        %v380 = vsel %vm364, %v321, 0.0
        %v381 = vsel %vm365, %v324, 0.0
        %v382 = vsel %vm366, %v327, 0.0
        %v383 = vsel %vm367, %v330, 0.0
        %v384 = vsel %vm368, %v333, 0.0
        %v385 = vadd.f32 %v369, %v370
        %v386 = vadd.f32 %v385, %v371
        %v387 = vadd.f32 %v386, %v372
        %v388 = vadd.f32 %v387, %v373
        %v389 = vadd.f32 %v388, %v374
        %v390 = vadd.f32 %v389, %v375
        %v391 = vadd.f32 %v390, %v376
        %v392 = vadd.f32 %v391, %v377
        %v393 = vadd.f32 %v392, %v378
        %v394 = vadd.f32 %v393, %v379
        %v395 = vadd.f32 %v394, %v380
        %v396 = vadd.f32 %v395, %v381
        %v397 = vadd.f32 %v396, %v382
        %v398 = vadd.f32 %v397, %v383
        %v399 = vadd.f32 %v398, %v384
        %v400 = vrot.slane %v399, 4
        %v401 = vadd.f32 %v399, %v400
        %v402 = vrot.slane %v401, 2
        %v403 = vadd.f32 %v401, %v402
        %v404 = vrot.slane %v403, 1
        %v405 = vadd.f32 %v403, %v404
        %v406 = vld [vmem:[%s236] sm:$0x1]
        %v407 = vld [vmem:[%s236 + $0x1] sm:$0x1]
        %v408 = vlaneseq
        %v409 = vshrl.u32 %v408, 7
        %v410 = vsub.s32 0, %v409
        %v411 = vrot.slane %v406, %v410
        %vm412 = vcmp.eq.s32.totalorder %v335, %v411
        %vm413 = vcmp.eq.s32.totalorder %v336, %v411
        %415 = vset.pattern.permute.xlu0 0
        %416 = vperm.xlu0 %415, %v243
        %v417 = vpop.permute.xlu0 %416
        %420 = vset.pattern.permute.xlu0 0
        %421 = vperm.xlu0 %420, %v244
        %v422 = vpop.permute.xlu0 %421
        %v424 = vsel %vm412, %v417, 0.0
        %v425 = vsel %vm413, %v422, 0.0
        %v426 = vlaneseq
        %v427 = vshrl.u32 %v426, 7
        %v428 = vsub.s32 0, %v427
        %v429 = vrot.slane %v407, %v428
        %vm430 = vcmp.eq.s32.totalorder %v335, %v429
        %vm431 = vcmp.eq.s32.totalorder %v336, %v429
        %432 = vset.pattern.permute.xlu0 1
        %433 = vperm.xlu0 %432, %v243
        %v434 = vpop.permute.xlu0 %433
        %436 = vset.pattern.permute.xlu0 1
        %437 = vperm.xlu0 %436, %v244
        %v438 = vpop.permute.xlu0 %437
        %v440 = vsel %vm430, %v434, 0.0
        %v441 = vsel %vm431, %v438, 0.0
        %v442 = vadd.f32 %v424, %v440
        %v443 = vadd.f32 %v425, %v441
        %v444 = vadd.f32 %v442, %v443
        %v445 = vrot.slane %v444, 4
        %v446 = vadd.f32 %v444, %v445
        %v447 = vrot.slane %v446, 2
        %v448 = vadd.f32 %v446, %v447
        %v449 = vrot.slane %v448, 1
        %v450 = vadd.f32 %v448, %v449
        %v451 = vadd.f32 %v450, %v405
        %453 = vset.pattern.permute.xlu0 0
        %454 = vperm.xlu0 %453, %v246
        %v455 = vpop.permute.xlu0 %454
        %v457 = vlaneseq
        %v458 = vshrl.u32 %v457, 7
        %v459 = vsub.s32 0, %v458
        %v460 = vrot.slane %v455, %v459
        %v461 = vadd.f32 %v451, %v460
        %462 = vst [vmem:[%s232] sm:$0x1] %v461
        %s463 = sand.u32 %s144, 1
        %s464 = scalar_lea.sflag [#allocation4], %s463
        %s465 = sand.u32 %s144, 1
        %s466 = scalar_lea.vmem [#allocation3], %s465
        // Predicated region
        $region41: #{gnn_conv_decoder.1} parent=39 // pred_check
          %p467 = pneg %p154
        $region42: #{gnn_conv_decoder.1} parent=39 // pred_check_branch
          %469 = sbr.rel (%p467) target = $region44
        $region43: #{gnn_conv_decoder.1} parent=39 // pred_region
          %s471 = ssub.s32 16, 16
          %472 = vsyncadd %s464, %s471
          %s473 = smul.addr %s21, 16
          %s474 = scalar_lea.hbm %s5, %s473
          %s476 = sshll.u32 %s466, 4
          %s477 = int_to_ptr.vmem [resolvable:$true] %s476
          %479 = dma.vmem_to_hbm [thread:$0]  %s477, 16, %s474, %s464
        $region44: #{gnn_conv_decoder.1} parent=39 // pred_fallthru
          _
      $region40: #{gnn_conv_decoder.1} parent=5 // pred_fallthru
        _
      %p480 = scmp.le.s32.totalorder 2, %s16
      // Predicated region
      $region45: #{gnn_conv_decoder.1} parent=5 // pred_check
        %p481 = pneg %p480
      $region46: #{gnn_conv_decoder.1} parent=5 // pred_check_branch
        %483 = sbr.rel (%p481) target = $region48
      $region47: #{gnn_conv_decoder.1} parent=5 // pred_region
        %s484 = ssub.s32 %s16, 2
        // Predicated region
        $region49: #{gnn_conv_decoder.1} parent=47 // pred_check
          %p485 = pneg %p160
        $region50: #{gnn_conv_decoder.1} parent=47 // pred_check_branch
          %487 = sbr.rel (%p485) target = $region52
        $region51: #{gnn_conv_decoder.1} parent=47 // pred_region
          %s488 = sand.u32 %s145, 1
          %s489 = scalar_lea.sflag [#allocation4], %s488
          %s490 = sand.u32 %s145, 1
          %s491 = scalar_lea.vmem [#allocation3], %s490
          %492 = dma.done %s489, 16
        $region52: #{gnn_conv_decoder.1} parent=47 // pred_fallthru
          _
      $region48: #{gnn_conv_decoder.1} parent=5 // pred_fallthru
        _
    $region6: #{gnn_conv_decoder.1} parent=1 // loop_footer
      %s20 = sadd.s32 1, %s16
    $region7: #{gnn_conv_decoder.1} parent=1 // loop_footer_branch
      %15 = sbr.rel target = $region3
    $region8: #{gnn_conv_decoder.1} parent=1 // loop_exit
      _
    %493 = vsyncpa [#allocation4], 1
    %s494 = scalar_lea.sflag [#allocation4], 1
    %495 = vsyncpa %s494, 1

</llo_original>
